<compile_context>
chip_gen: v6e
topology: v6e:2x2x1
jax: 0.10.0
libtpu: 0.0.40
codegen_flags: <defaults>
</compile_context>

<pallas_src>
import functools

import jax
import jax.numpy as jnp
from jax.experimental import pallas as pl
from jax.experimental.pallas import tpu as pltpu


def _round_up(x, m):
    return ((x + m - 1) // m) * m


def _cdiv(a, b):
    return (a + b - 1) // b


def _vpl_kernel(tok_ref, w_ref, bias_ref, out_ref):
    """One grid step: [bt*S_pad, K] @ [K, D_pad] on the MXU + fused f32 bias."""
    bt, s_pad, k = tok_ref.shape
    d_pad = w_ref.shape[1]
    # Collapse the batch block into one tall-M matmul (single MXU epoch per
    # step instead of bt small dots).  s_pad % 16 == 0 (bf16 sublane packing)
    # makes this reshape a free relayout.
    tok = tok_ref[...].reshape(bt * s_pad, k)
    acc = jnp.dot(tok, w_ref[...], preferred_element_type=jnp.float32)
    # Bias stays f32 and is added on the f32 accumulator (v5e has no bf16 VPU
    # path); one lane-dense bf16 store writes the whole [bt, S_pad, D_pad] block.
    out = acc.reshape(bt, s_pad, d_pad) + bias_ref[...][None]
    out_ref[...] = out.astype(out_ref.dtype)


def _vmem_budget_bytes():
    """Generation-aware VMEM budget (v5e/v6e: 128 MiB physical, v7x: 64 MiB)."""
    cap = 64 * 1024 * 1024
    try:
        cap = int(getattr(pltpu.get_tpu_info(), "vmem_capacity_bytes", cap))
    except Exception:  # fall back to the most conservative (v7x) assumption
        pass
    if cap >= 100 * 1024 * 1024:        # 128 MiB parts (v5e / v6e)
        return 80 * 1024 * 1024
    return 44 * 1024 * 1024             # v7x: leave room for internal scratch


def _choose_tiling(B, s_pad, k, d_pad, budget):
    """Pick (bt, nsteps, footprint): batch block per step + grid length."""
    # Per batch element per step: double-buffered bf16 tok-in and bf16 out
    # blocks, plus the f32 accumulator materialized for the dot result.
    per_elem = 2 * (s_pad * k * 2) + 2 * (s_pad * d_pad * 2) + s_pad * d_pad * 4
    # Single-buffered batch-invariant weight + bias, plus internal-scratch slack.
    resident = k * d_pad * 2 + s_pad * d_pad * 4 + (2 << 20)
    cap = max(1, (budget - resident) // max(per_elem, 1))
    # >= min(B, 4) grid steps keeps compute/DMA pipelining alive and gives both
    # v7x TensorCores >= 2 steps each whenever the batch allows it.
    nsteps = max(_cdiv(B, cap), min(B, 4))
    bt = _cdiv(B, nsteps)          # bt (nearly) divides B -> minimal zero-pad
    nsteps = _cdiv(B, bt)
    footprint = resident + bt * per_elem
    return bt, nsteps, footprint


@functools.partial(jax.jit, static_argnames=("patch_size", "channels_last"))
def vision_prompt_learner_fwd(x, conv_w, class_emb, pos_emb, p_input, p_visual,
                              patch_size, channels_last=False):
    """Wrapper: unfold patches (glue), run the Pallas kernel, return (tokens, p_visual)."""
    ps = patch_size
    if channels_last:
        B, H, W, C = x.shape
    else:
        B, C, H, W = x.shape
    gh, gw = H // ps, W // ps
    P = gh * gw
    D = conv_w.shape[0]
    K = C * ps * ps
    n_vpro = p_input.shape[0]
    S = 1 + P + n_vpro

    compute_dtype = jnp.bfloat16
    out_dtype = jnp.bfloat16

    # S -> multiple of 16 (bf16 sublane packing: free in-kernel reshape),
    # D -> multiple of 128 (lane-dense, unmasked output stores).
    # K is intentionally NOT padded in HBM (full-extent last dim is exempt from
    # the 128 rule; Mosaic pads the VMEM lane layout for free).
    S_pad = _round_up(S, 16)
    D_pad = _round_up(D, 128)

    # ---- patch unfold (wrapper glue; fused by XLA under jit) -----------------
    # Cast to bf16 BEFORE the reshape/transpose so the materialized transposed
    # intermediate costs half the HBM bytes.
    x = x.astype(compute_dtype)
    if channels_last:
        # NHWC source: unfold in (kh, kw, c) order and permute weight cols once.
        patches = x.reshape(B, gh, ps, gw, ps, C)
        patches = jnp.transpose(patches, (0, 1, 3, 2, 4, 5)).reshape(B, P, K)
        w_mat = jnp.transpose(conv_w, (2, 3, 1, 0)).reshape(K, D)
    else:
        # NCHW (PyTorch) source: (c, kh, kw) order matches Conv2d flattening.
        patches = x.reshape(B, C, gh, ps, gw, ps)
        patches = jnp.transpose(patches, (0, 2, 4, 1, 3, 5)).reshape(B, P, K)
        w_mat = conv_w.reshape(D, K).T
    w_mat = w_mat.astype(compute_dtype)

    # Fold the class-token row and the n_vpro prompt rows into the matmul as
    # zero pixel-rows; a single additive f32 bias supplies their values.
    tok_in = jnp.zeros((B, S_pad, K), compute_dtype)
    tok_in = tok_in.at[:, 1:1 + P, :].set(patches)

    w_pad = jnp.zeros((K, D_pad), compute_dtype).at[:, :D].set(w_mat)

    bias = jnp.zeros((S_pad, D_pad), jnp.float32)
    bias = bias.at[0, :D].set((class_emb + pos_emb[0]).astype(jnp.float32))
    bias = bias.at[1:1 + P, :D].set(pos_emb[1:1 + P].astype(jnp.float32))
    bias = bias.at[1 + P:S, :D].set(p_input.astype(jnp.float32))

    # ---- tiling / resource plumbing ------------------------------------------
    budget = _vmem_budget_bytes()
    bt, nsteps, footprint = _choose_tiling(B, S_pad, K, D_pad, budget)
    B_pad = bt * nsteps
    if B_pad != B:
        tok_in = jnp.pad(tok_in, ((0, B_pad - B), (0, 0), (0, 0)))

    # Explicit scoped-VMEM limit: the computed footprint + headroom (never below
    # 16 MiB, never above the generation budget).
    vmem_limit = int(min(budget, max(footprint + (4 << 20), 16 << 20)))

    cost = pl.CostEstimate(
        flops=2 * B_pad * S_pad * K * D_pad,
        transcendentals=0,
        bytes_accessed=(B_pad * S_pad * K * 2 + K * D_pad * 2
                        + S_pad * D_pad * 4 + B_pad * S_pad * D_pad * 2),
    )

    out = pl.pallas_call(
        _vpl_kernel,
        out_shape=jax.ShapeDtypeStruct((B_pad, S_pad, D_pad), out_dtype),
        grid_spec=pltpu.PrefetchScalarGridSpec(
            num_scalar_prefetch=0,
            grid=(nsteps,),
            in_specs=[
                # streamed token blocks (double-buffered by default)
                pl.BlockSpec((bt, S_pad, K), lambda b: (b, 0, 0)),
                # batch-invariant weight / bias: single-buffered to free VMEM
                pl.BlockSpec((K, D_pad), lambda b: (0, 0),
                             pipeline_mode=pl.Buffered(1)),
                pl.BlockSpec((S_pad, D_pad), lambda b: (0, 0),
                             pipeline_mode=pl.Buffered(1)),
            ],
            out_specs=pl.BlockSpec((bt, S_pad, D_pad), lambda b: (b, 0, 0)),
        ),
        compiler_params=pltpu.CompilerParams(
            dimension_semantics=("parallel",),
            vmem_limit_bytes=vmem_limit),
        cost_estimate=cost,
    )(tok_in, w_pad, bias)

    out = out[:B, :S, :D]
    # p_visual has no compute in forward; returned as-is (stack of per-layer params).
    return out, p_visual


def reference_fwd(x_nchw, conv_w, class_emb, pos_emb, p_input, patch_size):
    """Pure-JAX f32 reference of the same forward (for correctness check)."""
    B, C, H, W = x_nchw.shape
    ps = patch_size
    gh, gw = H // ps, W // ps
    P = gh * gw
    D = conv_w.shape[0]
    patches = x_nchw.reshape(B, C, gh, ps, gw, ps)
    patches = jnp.transpose(patches, (0, 2, 4, 1, 3, 5)).reshape(B, P, C * ps * ps)
    emb = patches @ conv_w.reshape(D, -1).T                    # [B, P, D]
    cls = jnp.broadcast_to(class_emb[None, None, :], (B, 1, D))
    tok = jnp.concatenate([cls, emb], axis=1) + pos_emb[None]  # [B, 1+P, D]
    pin = jnp.broadcast_to(p_input[None], (B,) + p_input.shape)
    return jnp.concatenate([tok, pin], axis=1)


if __name__ == "__main__":
    # Small synthetic CLIP-vision config.  B=6 exercises the bt>1 tall-matmul
    # path (nsteps=3, bt=2) without any batch zero-padding.
    B, C, H, W = 6, 3, 16, 16
    patch_size = 8
    D = 32                    # pro_dim / vision hidden size (padded to 128 inside)
    n_vpro = 4
    layers = 4                # encoder layers -> (layers - 1) p_visual params
    gh, gw = H // patch_size, W // patch_size
    P = gh * gw
    num_positions = P + 1

    key = jax.random.PRNGKey(0)
    k = jax.random.split(key, 6)
    x = jax.random.normal(k[0], (B, C, H, W), dtype=jnp.float32)
    conv_w = jax.random.normal(k[1], (D, C, patch_size, patch_size), jnp.float32) * 0.02
    class_emb = jax.random.normal(k[2], (D,), jnp.float32)
    pos_emb = jax.random.normal(k[3], (num_positions, D), jnp.float32) * 0.02
    p_input = jax.random.normal(k[4], (n_vpro, D), jnp.float32) * 0.02
    p_visual = jax.random.normal(k[5], (layers - 1, n_vpro, D), jnp.float32) * 0.02

    out, pv = vision_prompt_learner_fwd(
        x, conv_w, class_emb, pos_emb, p_input, p_visual, patch_size)
    out = jax.block_until_ready(out)

    ref = reference_fwd(x, conv_w, class_emb, pos_emb, p_input, patch_size)
    assert out.shape == (B, 1 + P + n_vpro, D), out.shape
    assert out.dtype == jnp.bfloat16, out.dtype
    # bf16 matmul operands + bf16 output -> loose tolerance vs the f32 reference.
    max_err = float(jnp.max(jnp.abs(out.astype(jnp.float32) - ref)))
    assert max_err < 5e-2, f"mismatch vs reference, max abs err = {max_err}"
    assert pv.shape == (layers - 1, n_vpro, D)

    print("KERNEL_OK")
</pallas_src>

<mosaic_0001>
module attributes {stable_mosaic.version = 11 : i64} {
  func.func @_vpl_kernel(%arg0: i32, %arg1: memref<2x16x192xbf16, #tpu.memory_space<vmem>>, %arg2: memref<192x128xbf16, #tpu.memory_space<vmem>>, %arg3: memref<16x128xf32, #tpu.memory_space<vmem>>, %arg4: memref<2x16x128xbf16, #tpu.memory_space<vmem>>) attributes {dimension_semantics = [#tpu.dimension_semantics<parallel>], iteration_bounds = array<i64: 3>, scalar_prefetch = 0 : i64, scratch_operands = 0 : i64, tpu.core_type = #tpu.core_type<tc>, window_params = [{transform_indices = @transform_0, window_bounds = array<i64: 2, 16, 192>}, {pipeline_mode = #tpu.pipeline_mode<synchronous>, transform_indices = @transform_1, window_bounds = array<i64: 192, 128>}, {pipeline_mode = #tpu.pipeline_mode<synchronous>, transform_indices = @transform_2, window_bounds = array<i64: 16, 128>}, {transform_indices = @transform_3, window_bounds = array<i64: 2, 16, 128>}]} {
    %c0 = arith.constant 0 : index
    %c0_0 = arith.constant 0 : index
    %c0_1 = arith.constant 0 : index
    %0 = vector.load %arg1[%c0, %c0_0, %c0_1] : memref<2x16x192xbf16, #tpu.memory_space<vmem>>, vector<2x16x192xbf16>
    %1 = vector.shape_cast %0 : vector<2x16x192xbf16> to vector<32x192xbf16>
    %c0_2 = arith.constant 0 : index
    %c0_3 = arith.constant 0 : index
    %2 = vector.load %arg2[%c0_2, %c0_3] : memref<192x128xbf16, #tpu.memory_space<vmem>>, vector<192x128xbf16>
    %cst = arith.constant dense<0.000000e+00> : vector<32x128xf32>
    %3 = tpu.matmul %1, %2, %cst {dimension_numbers = #tpu.dot_dimension_numbers<[1], [0], [0], [1], [0, 0, 1, 1], [], []>} : vector<32x192xbf16>, vector<192x128xbf16>, vector<32x128xf32> -> vector<32x128xf32>
    %4 = vector.shape_cast %3 : vector<32x128xf32> to vector<2x16x128xf32>
    %c0_4 = arith.constant 0 : index
    %c0_5 = arith.constant 0 : index
    %5 = vector.load %arg3[%c0_4, %c0_5] : memref<16x128xf32, #tpu.memory_space<vmem>>, vector<16x128xf32>
    %6 = vector.shape_cast %5 : vector<16x128xf32> to vector<1x16x128xf32>
    %7 = vector.broadcast %6 : vector<1x16x128xf32> to vector<2x16x128xf32>
    %8 = arith.addf %4, %7 : vector<2x16x128xf32>
    %9 = arith.truncf %8 : vector<2x16x128xf32> to vector<2x16x128xbf16>
    %c0_6 = arith.constant 0 : index
    %c0_7 = arith.constant 0 : index
    %c0_8 = arith.constant 0 : index
    %10 = vector.load %arg4[%c0_6, %c0_7, %c0_8] : memref<2x16x128xbf16, #tpu.memory_space<vmem>>, vector<2x16x128xbf16>
    tpu.vector_store %arg4[%c0_6, %c0_7, %c0_8], %9 {strides = array<i32>} : memref<2x16x128xbf16, #tpu.memory_space<vmem>>, vector<2x16x128xbf16>,
    return
  }
  func.func @transform_0(%arg0: i32) -> (i32, i32, i32) {
    %c0_i32 = arith.constant 0 : i32
    %c0_i32_0 = arith.constant 0 : i32
    %c0_i32_1 = arith.constant 0 : i32
    return %arg0, %c0_i32, %c0_i32_0 : i32, i32, i32
  }
  func.func @transform_1(%arg0: i32) -> (i32, i32) {
    %c0_i32 = arith.constant 0 : i32
    %c0_i32_0 = arith.constant 0 : i32
    %c0_i32_1 = arith.constant 0 : i32
    return %c0_i32, %c0_i32_0 : i32, i32
  }
  func.func @transform_2(%arg0: i32) -> (i32, i32) {
    %c0_i32 = arith.constant 0 : i32
    %c0_i32_0 = arith.constant 0 : i32
    %c0_i32_1 = arith.constant 0 : i32
    return %c0_i32, %c0_i32_0 : i32, i32
  }
  func.func @transform_3(%arg0: i32) -> (i32, i32, i32) {
    %c0_i32 = arith.constant 0 : i32
    %c0_i32_0 = arith.constant 0 : i32
    %c0_i32_1 = arith.constant 0 : i32
    return %arg0, %c0_i32, %c0_i32_0 : i32, i32, i32
  }
}

</mosaic_0001>

<llo_original>
// kernel: vision_prompt_learner_fwd.1
$region0: #{vision_prompt_learner_fwd.1}
  #allocation0 [shape = 'u32[]', space=smem, size = 0x4, offset = 0x4, fixed_abs, tag = 'smem constant byte address 0x4 - core index']
  #allocation1 [shape = 'u32[144,128]{1,0:T(1,128)}', space=vmem, size = 0x12000, scoped, tag = 'internal scratch']
  %s0 = inlined_call_operand.vmem [shape: bf16[6,16,192], index: 0, kind: input, shape index: {}]
  %s1 = inlined_call_operand.vmem [shape: bf16[192,128], index: 1, kind: input, shape index: {}]
  %s2 = inlined_call_operand.vmem [shape: f32[16,128], index: 2, kind: input, shape index: {}]
  %s3 = inlined_call_operand.vmem [shape: bf16[6,16,128], index: 3, kind: output, shape index: {}]
  %s4 = sld [smem:[#allocation0]]
  $region45: #{vision_prompt_learner_fwd.1} parent=0
    _
  %s6 = ssub.s32 1, %s4
  %s7 = scalar_select 0, %s6, %s4
  loop: start=0, step=1, limit=5
  $region2: #{vision_prompt_learner_fwd.1} parent=0 // loop_pre_header
    _
  $region3: #{vision_prompt_learner_fwd.1} parent=0 // loop_header
    %s9 = sphi 0, %s13
    %p10 = scmp.ge.s32.totalorder %s9, 5
    %s19 = sphi 0, %s21
    %s22 = sphi 0, %s19
    %s23 = sphi 0, %s22
    %s39 = sphi 0, %s23
    %s43 = sphi 0, %s43
    %s45 = sphi 0, %s43
    %s46 = sphi 0, %s45
    %s60 = sphi 0, %s46
    %s64 = sphi 0, %s64
    %s66 = sphi 0, %s64
    %s67 = sphi 0, %s66
    %s81 = sphi 0, %s67
    %s87 = sphi 0, %s89
    %s90 = sphi 0, %s87
    %s91 = sphi 0, %s90
    %s107 = sphi 0, %s91
  $region4: #{vision_prompt_learner_fwd.1} parent=0 // loop_header_branch
    %12 = sbr.rel (%p10) target = $region8
  $region5: #{vision_prompt_learner_fwd.1} parent=0 // loop_body
    %s14 = ssub.s32 %s9, 1
    %s15 = ssub.s32 %s9, 2
    %s16 = sadd.s32 %s9, 1
    %s17 = ssub.s32 %s9, %s16
    %p18 = scmp.eq.s32.totalorder %s17, 0
    %s20 = sadd.s32 %s19, 1
    %s21 = scalar_select %p18, %s19, %s20
    %p24 = pneg %p18
    %p25 = scmp.eq.s32.totalorder %s9, 2
    %p26 = por %p24, %p25
    %p27 = scmp.ne.s32.totalorder %s19, %s22
    %p28 = scmp.eq.s32.totalorder %s9, 0
    %p29 = por %p27, %p28
    %p30 = scmp.ne.s32.totalorder %s19, %s22
    %p31 = scmp.eq.s32.totalorder %s14, 2
    %p32 = por %p30, %p31
    %p33 = scmp.ne.s32.totalorder %s22, %s23
    %p34 = scmp.eq.s32.totalorder %s14, 0
    %p35 = por %p33, %p34
    %p36 = scmp.ne.s32.totalorder %s22, %s23
    %p37 = scmp.eq.s32.totalorder %s15, 2
    %p38 = por %p36, %p37
    %p40 = scmp.ne.s32.totalorder %s23, %s39
    %p41 = scmp.eq.s32.totalorder %s15, 0
    %p42 = por %p40, %p41
    %s44 = sadd.s32 %s43, 1
    %p47 = scmp.eq.s32.totalorder %s9, 2
    %p48 = scmp.ne.s32.totalorder %s43, %s45
    %p49 = scmp.eq.s32.totalorder %s9, 0
    %p50 = por %p48, %p49
    %p51 = scmp.ne.s32.totalorder %s43, %s45
    %p52 = scmp.eq.s32.totalorder %s14, 2
    %p53 = por %p51, %p52
    %p54 = scmp.ne.s32.totalorder %s45, %s46
    %p55 = scmp.eq.s32.totalorder %s14, 0
    %p56 = por %p54, %p55
    %p57 = scmp.ne.s32.totalorder %s45, %s46
    %p58 = scmp.eq.s32.totalorder %s15, 2
    %p59 = por %p57, %p58
    %p61 = scmp.ne.s32.totalorder %s46, %s60
    %p62 = scmp.eq.s32.totalorder %s15, 0
    %p63 = por %p61, %p62
    %s65 = sadd.s32 %s64, 1
    %p68 = scmp.eq.s32.totalorder %s9, 2
    %p69 = scmp.ne.s32.totalorder %s64, %s66
    %p70 = scmp.eq.s32.totalorder %s9, 0
    %p71 = por %p69, %p70
    %p72 = scmp.ne.s32.totalorder %s64, %s66
    %p73 = scmp.eq.s32.totalorder %s14, 2
    %p74 = por %p72, %p73
    %p75 = scmp.ne.s32.totalorder %s66, %s67
    %p76 = scmp.eq.s32.totalorder %s14, 0
    %p77 = por %p75, %p76
    %p78 = scmp.ne.s32.totalorder %s66, %s67
    %p79 = scmp.eq.s32.totalorder %s15, 2
    %p80 = por %p78, %p79
    %p82 = scmp.ne.s32.totalorder %s67, %s81
    %p83 = scmp.eq.s32.totalorder %s15, 0
    %p84 = por %p82, %p83
    %s85 = ssub.s32 %s9, %s16
    %p86 = scmp.eq.s32.totalorder %s85, 0
    %s88 = sadd.s32 %s87, 1
    %s89 = scalar_select %p86, %s87, %s88
    %p92 = pneg %p86
    %p93 = scmp.eq.s32.totalorder %s9, 2
    %p94 = por %p92, %p93
    %p95 = scmp.ne.s32.totalorder %s87, %s90
    %p96 = scmp.eq.s32.totalorder %s9, 0
    %p97 = por %p95, %p96
    %p98 = scmp.ne.s32.totalorder %s87, %s90
    %p99 = scmp.eq.s32.totalorder %s14, 2
    %p100 = por %p98, %p99
    %p101 = scmp.ne.s32.totalorder %s90, %s91
    %p102 = scmp.eq.s32.totalorder %s14, 0
    %p103 = por %p101, %p102
    %p104 = scmp.ne.s32.totalorder %s90, %s91
    %p105 = scmp.eq.s32.totalorder %s15, 2
    %p106 = por %p104, %p105
    %p108 = scmp.ne.s32.totalorder %s91, %s107
    %p109 = scmp.eq.s32.totalorder %s15, 0
    %p110 = por %p108, %p109
    %p111 = scmp.le.s32.totalorder 1, %s9
    %p112 = scmp.lt.s32.totalorder %s9, 4
    %p113 = pnand %p111, %p112
    %p114 = pneg %p113
    // Predicated region
    $region9: #{vision_prompt_learner_fwd.1} parent=5 // pred_check
      _
    $region10: #{vision_prompt_learner_fwd.1} parent=5 // pred_check_branch
      %116 = sbr.rel (%p113) target = $region12
    $region11: #{vision_prompt_learner_fwd.1} parent=5 // pred_region
      %s117 = ssub.s32 %s9, 1
      // Predicated region
      $region13: #{vision_prompt_learner_fwd.1} parent=11 // pred_check
        %p118 = pneg %p56
      $region14: #{vision_prompt_learner_fwd.1} parent=11 // pred_check_branch
        %120 = sbr.rel (%p118) target = $region16
      $region15: #{vision_prompt_learner_fwd.1} parent=11 // pred_region
        _
      $region16: #{vision_prompt_learner_fwd.1} parent=11 // pred_fallthru
        _
      // Predicated region
      $region17: #{vision_prompt_learner_fwd.1} parent=11 // pred_check
        %p121 = pneg %p77
      $region18: #{vision_prompt_learner_fwd.1} parent=11 // pred_check_branch
        %123 = sbr.rel (%p121) target = $region20
      $region19: #{vision_prompt_learner_fwd.1} parent=11 // pred_region
        _
      $region20: #{vision_prompt_learner_fwd.1} parent=11 // pred_fallthru
        _
    $region12: #{vision_prompt_learner_fwd.1} parent=5 // pred_fallthru
      _
    %p124 = scmp.lt.s32.totalorder %s9, 3
    // Predicated region
    $region21: #{vision_prompt_learner_fwd.1} parent=5 // pred_check
      %p125 = pneg %p124
    $region22: #{vision_prompt_learner_fwd.1} parent=5 // pred_check_branch
      %127 = sbr.rel (%p125) target = $region24
    $region23: #{vision_prompt_learner_fwd.1} parent=5 // pred_region
      // Predicated region
      $region25: #{vision_prompt_learner_fwd.1} parent=23 // pred_check
        %p128 = pneg %p29
      $region26: #{vision_prompt_learner_fwd.1} parent=23 // pred_check_branch
        %130 = sbr.rel (%p128) target = $region28
      $region27: #{vision_prompt_learner_fwd.1} parent=23 // pred_region
        %s131 = smul.u32 2, %s9
        %p132 = scmp.lt.s32.totalorder %s131, 5
        %s133 = scalar_select %p132, %s131, 5
        %s134 = smul.addr %s133, 4
        %s135 = smul.addr %s134, 4
        %s136 = scalar_lea.vmem %s0, %s135
        %s137 = smul.u32 2, %s9
      $region28: #{vision_prompt_learner_fwd.1} parent=23 // pred_fallthru
        _
    $region24: #{vision_prompt_learner_fwd.1} parent=5 // pred_fallthru
      _
    %p138 = scmp.le.s32.totalorder 1, %s9
    %p139 = scmp.lt.s32.totalorder %s9, 4
    %p140 = pnand %p138, %p139
    %p141 = pneg %p140
    // Predicated region
    $region29: #{vision_prompt_learner_fwd.1} parent=5 // pred_check
      _
    $region30: #{vision_prompt_learner_fwd.1} parent=5 // pred_check_branch
      %143 = sbr.rel (%p140) target = $region32
    $region31: #{vision_prompt_learner_fwd.1} parent=5 // pred_region
      %s144 = ssub.s32 %s9, 1
      %s145 = smul.u32 2, %s14
      %p146 = scmp.lt.s32.totalorder %s145, 5
      %s147 = scalar_select %p146, %s145, 5
      %s148 = smul.addr %s147, 4
      %s149 = smul.addr %s148, 4
      %s150 = scalar_lea.vmem %s0, %s149
      %p151 = pneg %p35
      %p152 = pneg %p32
      %p153 = pneg %p56
      %p154 = pneg %p53
      %p155 = pneg %p77
      %p156 = pneg %p74
      %p157 = pneg %p103
      %p158 = pneg %p100
      %s159 = smul.u32 2, %s14
      %p160 = scmp.lt.s32.totalorder %s159, 5
      %s161 = scalar_select %p160, %s159, 5
      %s162 = smul.addr %s161, 2
      %s163 = smul.addr %s162, 4
      %s164 = scalar_lea.vmem %s3, %s163
      %s165 = smul.u32 2, %s14
      %p166 = scmp.lt.s32.totalorder %s165, 5
      %s167 = scalar_select %p166, %s165, 5
      %s168 = smul.addr %s167, 4
      %s169 = smul.addr %s168, 4
      %s170 = scalar_lea.vmem %s0, %s169
      %s171 = smul.u32 2, %s14
      %s172 = smul.u32 2, %s14
      %p173 = scmp.lt.s32.totalorder %s172, 5
      %s174 = scalar_select %p173, %s172, 5
      %s175 = smul.addr %s174, 2
      %s176 = smul.addr %s175, 4
      %s177 = scalar_lea.vmem %s3, %s176
      %s178 = smul.u32 2, %s14
      %v180 = vld [vmem:[%s170] sm:$0xff]
      %v181 = vld [vmem:[%s170 + $0x8] sm:$0xff]
      %v182 = vld [vmem:[%s170 + $0x10] sm:$0xff]
      %v183 = vld [vmem:[%s170 + $0x18] sm:$0xff]
      %v184 = vld [vmem:[%s1] sm:$0xf]
      %v185 = vld [vmem:[%s1 + $0x4] sm:$0xf]
      %v186 = vld [vmem:[%s1 + $0x8] sm:$0xf]
      %v187 = vld [vmem:[%s1 + $0xc] sm:$0xf]
      %v188 = vld [vmem:[%s1 + $0x10] sm:$0xf]
      %v189 = vld [vmem:[%s1 + $0x14] sm:$0xf]
      %v190 = vld [vmem:[%s1 + $0x18] sm:$0xf]
      %v191 = vld [vmem:[%s1 + $0x1c] sm:$0xf]
      %v192 = vld [vmem:[%s1 + $0x20] sm:$0xf]
      %v193 = vld [vmem:[%s1 + $0x24] sm:$0xf]
      %v194 = vld [vmem:[%s1 + $0x28] sm:$0xf]
      %v195 = vld [vmem:[%s1 + $0x2c] sm:$0xf]
      %v196 = vld [vmem:[%s1 + $0x30] sm:$0xf]
      %v197 = vld [vmem:[%s1 + $0x34] sm:$0xf]
      %v198 = vld [vmem:[%s1 + $0x38] sm:$0xf]
      %v199 = vld [vmem:[%s1 + $0x3c] sm:$0xf]
      %v200 = vld [vmem:[%s1 + $0x40] sm:$0xf]
      %v201 = vld [vmem:[%s1 + $0x44] sm:$0xf]
      %v202 = vld [vmem:[%s1 + $0x48] sm:$0xf]
      %v203 = vld [vmem:[%s1 + $0x4c] sm:$0xf]
      %v204 = vld [vmem:[%s1 + $0x50] sm:$0xf]
      %v205 = vld [vmem:[%s1 + $0x54] sm:$0xf]
      %v206 = vld [vmem:[%s1 + $0x58] sm:$0xf]
      %v207 = vld [vmem:[%s1 + $0x5c] sm:$0xf]
      %v212 = vunpack.c.l.b16 %v180
      %v213 = vunpack.c.h.b16 %v180
      %v214 = vunpack.c.l.b16 %v181
      %v215 = vunpack.c.h.b16 %v181
      %v216 = vunpack.c.l.b16 %v182
      %v217 = vunpack.c.h.b16 %v182
      %v218 = vunpack.c.l.b16 %v183
      %v219 = vunpack.c.h.b16 %v183
      %v220 = vpack.c.b16 %v214, %v212
      %v221 = vpack.c.b16 %v215, %v213
      %v222 = vpack.c.b16 %v218, %v216
      %v223 = vpack.c.b16 %v219, %v217
      %v250 = vunpack.c.l.b16 %v184
      %v251 = vunpack.c.l.b16 %v185
      %v252 = vunpack.c.l.b16 %v186
      %v253 = vunpack.c.l.b16 %v187
      %v254 = vunpack.c.l.b16 %v188
      %v255 = vunpack.c.l.b16 %v189
      %v256 = vunpack.c.l.b16 %v190
      %v257 = vunpack.c.l.b16 %v191
      %v258 = vunpack.c.l.b16 %v192
      %v259 = vunpack.c.l.b16 %v193
      %v260 = vunpack.c.l.b16 %v194
      %v261 = vunpack.c.l.b16 %v195
      %v262 = vunpack.c.l.b16 %v196
      %v263 = vunpack.c.l.b16 %v197
      %v264 = vunpack.c.l.b16 %v198
      %v265 = vunpack.c.l.b16 %v199
      %v266 = vunpack.c.l.b16 %v200
      %v267 = vunpack.c.l.b16 %v201
      %v268 = vunpack.c.l.b16 %v202
      %v269 = vunpack.c.l.b16 %v203
      %v270 = vunpack.c.l.b16 %v204
      %v271 = vunpack.c.l.b16 %v205
      %v272 = vunpack.c.l.b16 %v206
      %v273 = vunpack.c.l.b16 %v207
      %v274 = vpack.c.b16 %v251, %v250
      %v275 = vpack.c.b16 %v253, %v252
      %v276 = vpack.c.b16 %v255, %v254
      %v277 = vpack.c.b16 %v257, %v256
      %v278 = vpack.c.b16 %v259, %v258
      %v279 = vpack.c.b16 %v261, %v260
      %v280 = vpack.c.b16 %v263, %v262
      %v281 = vpack.c.b16 %v265, %v264
      %v282 = vpack.c.b16 %v267, %v266
      %v283 = vpack.c.b16 %v269, %v268
      %v284 = vpack.c.b16 %v271, %v270
      %v285 = vpack.c.b16 %v273, %v272
      %vm298 = vcmask 523264
      %v300 = vsel %vm298, %v221, 0
      %v303 = vsel %vm298, %v223, 0
      %305 = vmatprep.subr.bf16.mxu0 0
      %306 = vmatpush1.bf16.msra.mxu0 %v281
      %307 = vmatprep.subr.bf16.mxu0 0
      %308 = vmatpush1.bf16.msra.mxu0 %v280
      %309 = vmatprep.subr.bf16.mxu0 0
      %310 = vmatpush1.bf16.msra.mxu0 %v279
      %311 = vmatprep.subr.bf16.mxu0 0
      %312 = vmatpush1.bf16.msra.mxu0 %v278
      %313 = vmatprep.subr.bf16.mxu0 0
      %314 = vmatpush1.bf16.msra.mxu0 %v277
      %315 = vmatprep.subr.bf16.mxu0 0
      %316 = vmatpush1.bf16.msra.mxu0 %v276
      %317 = vmatprep.subr.bf16.mxu0 0
      %318 = vmatpush1.bf16.msra.mxu0 %v275
      %319 = vmatprep.subr.bf16.mxu0 0
      %320 = vmatpush1.bf16.msra.mxu0 %v274
      %321 = vmatprep.subr.bf16.mxu0 0
      %322 = vmatpush2.bf16.msra.mxu0 0
      %323 = vmatprep.subr.bf16.mxu0 0
      %324 = vmatpush2.bf16.msra.mxu0 0
      %325 = vmatprep.subr.bf16.mxu0 0
      %326 = vmatpush2.bf16.msra.mxu0 0
      %327 = vmatprep.subr.bf16.mxu0 0
      %328 = vmatpush2.bf16.msra.mxu0 0
      %329 = vmatprep.subr.bf16.mxu0 0
      %330 = vmatpush2.bf16.msra.mxu0 %v285
      %331 = vmatprep.subr.bf16.mxu0 0
      %332 = vmatpush2.bf16.msra.mxu0 %v284
      %333 = vmatprep.subr.bf16.mxu0 0
      %334 = vmatpush2.bf16.msra.mxu0 %v283
      %335 = vmatprep.subr.bf16.mxu0 0
      %336 = vmatpush2.bf16.msra.mxu0 %v282
      %337 = vmatprep.mubr.bf16.mxu0 %v300
      %338 = vmatmul.mubr.bf16.gmra.mxu0 %v220
      %v339 = vpop.f32.mrf.mxu0
      %v340 = vadd.f32 0.0, %v339
      %v341 = vpop.f32.mrf.mxu0
      %v342 = vpop.f32.mrf.mxu0
      %v343 = vadd.f32 0.0, %v342
      %v344 = vpop.f32.mrf.mxu0
      %345 = vmatprep.mubr.bf16.mxu0 %v303
      %346 = vmatmul.mubr.bf16.gmra.mxu0 %v222
      %v347 = vpop.f32.mrf.mxu0
      %v348 = vadd.f32 0.0, %v347
      %v349 = vpop.f32.mrf.mxu0
      %v350 = vpop.f32.mrf.mxu0
      %v351 = vadd.f32 0.0, %v350
      %v352 = vpop.f32.mrf.mxu0
      %353 = vdwg.mxu0
      %v354 = vld [vmem:[%s2] sm:$0xff]
      %v355 = vld [vmem:[%s2 + $0x8] sm:$0xff]
      %v356 = vadd.f32 %v340, %v354
      %v357 = vadd.f32 %v343, %v355
      %v358 = vadd.f32 %v348, %v354
      %v359 = vadd.f32 %v351, %v355
      %v360 = vpack.c.bf16 %v357, %v356
      %v361 = vpack.c.bf16 %v359, %v358
      %v364 = vunpack.c.l.b16 %v360
      %v365 = vunpack.c.h.b16 %v360
      %v366 = vunpack.c.l.b16 %v361
      %v367 = vunpack.c.h.b16 %v361
      %v368 = vpack.c.b16 %v364, %v364
      %v369 = vpack.c.b16 %v365, %v365
      %v370 = vpack.c.b16 %v366, %v366
      %v371 = vpack.c.b16 %v367, %v367
      %376 = vst [vmem:[%s177] sm:$0xf] %v368
      %377 = vst [vmem:[%s177 + $0x4] sm:$0xf] %v369
      %378 = vst [vmem:[%s177 + $0x8] sm:$0xf] %v370
      %379 = vst [vmem:[%s177 + $0xc] sm:$0xf] %v371
      %s380 = smul.u32 2, %s14
      %p381 = scmp.lt.s32.totalorder %s380, 5
      %s382 = scalar_select %p381, %s380, 5
      %s383 = smul.addr %s382, 2
      %s384 = smul.addr %s383, 4
      %s385 = scalar_lea.vmem %s3, %s384
      // Predicated region
      $region33: #{vision_prompt_learner_fwd.1} parent=31 // pred_check
        %p386 = pneg %p100
      $region34: #{vision_prompt_learner_fwd.1} parent=31 // pred_check_branch
        %388 = sbr.rel (%p386) target = $region36
      $region35: #{vision_prompt_learner_fwd.1} parent=31 // pred_region
        %s389 = smul.u32 2, %s14
      $region36: #{vision_prompt_learner_fwd.1} parent=31 // pred_fallthru
        _
    $region32: #{vision_prompt_learner_fwd.1} parent=5 // pred_fallthru
      _
    %p390 = scmp.le.s32.totalorder 2, %s9
    // Predicated region
    $region37: #{vision_prompt_learner_fwd.1} parent=5 // pred_check
      %p391 = pneg %p390
    $region38: #{vision_prompt_learner_fwd.1} parent=5 // pred_check_branch
      %393 = sbr.rel (%p391) target = $region40
    $region39: #{vision_prompt_learner_fwd.1} parent=5 // pred_region
      %s394 = ssub.s32 %s9, 2
      // Predicated region
      $region41: #{vision_prompt_learner_fwd.1} parent=39 // pred_check
        %p395 = pneg %p106
      $region42: #{vision_prompt_learner_fwd.1} parent=39 // pred_check_branch
        %397 = sbr.rel (%p395) target = $region44
      $region43: #{vision_prompt_learner_fwd.1} parent=39 // pred_region
        %s398 = smul.u32 2, %s15
        %p399 = scmp.lt.s32.totalorder %s398, 5
        %s400 = scalar_select %p399, %s398, 5
        %s401 = smul.addr %s400, 2
        %s402 = smul.addr %s401, 4
        %s403 = scalar_lea.vmem %s3, %s402
      $region44: #{vision_prompt_learner_fwd.1} parent=39 // pred_fallthru
        _
    $region40: #{vision_prompt_learner_fwd.1} parent=5 // pred_fallthru
      _
  $region6: #{vision_prompt_learner_fwd.1} parent=0 // loop_footer
    %s13 = sadd.s32 1, %s9
  $region7: #{vision_prompt_learner_fwd.1} parent=0 // loop_footer_branch
    %8 = sbr.rel target = $region3
  $region8: #{vision_prompt_learner_fwd.1} parent=0 // loop_exit
    _

</llo_original>
